<compile_context>
chip_gen: v6e
topology: v6e:2x2x1
jax: 0.10.0
libtpu: 0.0.40
codegen_flags: <defaults>
</compile_context>

<pallas_src>
import functools

import jax
import jax.numpy as jnp
from jax.experimental import pallas as pl
from jax.experimental.pallas import tpu as pltpu


_MAX_TM = 256           # batch-tile upper bound (good default for v6e/v7x)
_TARGET_GRID_STEPS = 4  # aim for >= ~4 batch tiles: megacore sharding + pipelining
_LANE = 128


def _round_up(x: int, m: int) -> int:
    return ((x + m - 1) // m) * m


def _vmem_capacity_bytes() -> int:
    try:
        return int(pltpu.get_tpu_info().vmem_capacity_bytes)
    except Exception:
        return 64 * 1024 * 1024  # conservative default (v7x per-TC VMEM)


def _fused_group_kernel(x_ref, *refs, num_layers: int, matmul_dtype):
    """[Linear -> SiLU] * num_layers on one (tm, d_in) batch tile.

    refs = (w_0, b_0, ..., w_{L-1}, b_{L-1}, o_ref).  Weights are VMEM-resident
    (constant index_map), already stored in `matmul_dtype`; the layer loop is a
    static Python unroll so intermediate activations never touch HBM.
    """
    o_ref = refs[2 * num_layers]
    h = x_ref[...].astype(matmul_dtype)
    act = None
    for l in range(num_layers):
        w = refs[2 * l][...]                              # (k, n_pad), matmul_dtype
        b = refs[2 * l + 1][...].astype(jnp.float32)      # (1, n_pad), f32
        y = jnp.dot(h, w, preferred_element_type=jnp.float32) + b
        # SiLU(y) = y * sigmoid(y); sigmoid goes to the EUP slot (~free filler).
        act = y * jax.nn.sigmoid(y)                       # f32
        h = act.astype(matmul_dtype)                      # feed next MXU pass
    o_ref[...] = act.astype(o_ref.dtype)


def _call_group(x, group_params, tm, out_dtype, matmul_dtype, *, single_buffer_weights):
    """One fused pallas_call over a consecutive group of layers."""
    b_pad, d_in = x.shape
    num_layers = len(group_params)
    d_out = group_params[-1][0].shape[1]
    grid = (b_pad // tm,)

    const_kwargs = {"pipeline_mode": pl.Buffered(1)} if single_buffer_weights else {}

    in_specs = [pl.BlockSpec((tm, d_in), lambda i: (i, 0))]
    flat = []
    for w, b in group_params:
        in_specs.append(pl.BlockSpec(w.shape, lambda i: (0, 0), **const_kwargs))
        in_specs.append(pl.BlockSpec(b.shape, lambda i: (0, 0), **const_kwargs))
        flat.extend((w, b))
    out_spec = pl.BlockSpec((tm, d_out), lambda i: (i, 0))

    # VMEM budget: weights/biases (x2 if double-buffered), double-buffered x/out
    # tiles, per-layer f32 intermediates, ~4 MiB headroom; clamp below capacity.
    w_bytes = sum(int(a.size) * a.dtype.itemsize for a in flat)
    w_bytes *= 1 if single_buffer_weights else 2
    io_bytes = (2 * tm * d_in * x.dtype.itemsize
                + 2 * tm * d_out * jnp.dtype(out_dtype).itemsize)
    act_bytes = sum(2 * tm * w.shape[1] * 4 for w, _ in group_params)
    vmem_limit = int(min(int(0.95 * _vmem_capacity_bytes()),
                         max(32 << 20, w_bytes + io_bytes + act_bytes + (4 << 20))))

    flops = sum(2 * b_pad * w.shape[0] * w.shape[1] for w, _ in group_params)
    transcendentals = sum(b_pad * w.shape[1] for w, _ in group_params)
    bytes_accessed = (x.size * x.dtype.itemsize
                      + sum(int(a.size) * a.dtype.itemsize for a in flat)
                      + b_pad * d_out * jnp.dtype(out_dtype).itemsize)

    kernel = functools.partial(
        _fused_group_kernel, num_layers=num_layers, matmul_dtype=matmul_dtype
    )
    return pl.pallas_call(
        kernel,
        out_shape=jax.ShapeDtypeStruct((b_pad, d_out), out_dtype),
        grid=grid,
        in_specs=in_specs,
        out_specs=out_spec,
        compiler_params=pltpu.CompilerParams(
            dimension_semantics=("parallel",),
            vmem_limit_bytes=vmem_limit,
        ),
        cost_estimate=pl.CostEstimate(
            flops=flops,
            transcendentals=transcendentals,
            bytes_accessed=bytes_accessed,
        ),
    )(x, *flat)


def fused_encoder_forward(x, padded_params, dims, *, matmul_dtype=jnp.bfloat16):
    """Run the encoder with one fused Pallas kernel per VMEM-sized layer group."""
    B, d0 = x.shape
    assert d0 == dims[0], (d0, dims[0])
    if B == 0:
        return jnp.zeros((0, dims[-1]), x.dtype)

    # Batch tile: multiple of 8 (16 for packed bf16 sublanes), sized so the grid
    # has ~_TARGET_GRID_STEPS steps (megacore sharding + DMA/compute overlap).
    granule = 16 if jnp.dtype(matmul_dtype).itemsize < 4 else 8
    tm = _round_up(pl.cdiv(B, _TARGET_GRID_STEPS), granule)
    tm = max(granule, min(tm, _MAX_TM))
    b_pad = _round_up(B, tm)

    # Only cheap batch padding on the host; features are never padded host-side.
    x_b = x if b_pad == B else jnp.pad(x, ((0, b_pad - B), (0, 0)))

    # Split layers into consecutive groups whose (single-buffered) weights fit
    # in a VMEM budget — keeps the design working on v7x's 64 MiB VMEM.
    # TODO(synk): a single layer whose weight alone exceeds the budget would
    # need output-dim (N) tiling with per-tile accumulation; not implemented.
    budget = max(8 << 20, int(0.55 * _vmem_capacity_bytes()))
    groups, cur, cur_bytes = [], [], 0
    for w, b in padded_params:
        nbytes = int(w.size) * w.dtype.itemsize + int(b.size) * b.dtype.itemsize
        if cur and cur_bytes + nbytes > budget:
            groups.append(cur)
            cur, cur_bytes = [], 0
        cur.append((w, b))
        cur_bytes += nbytes
    groups.append(cur)

    h = x_b
    inter_dtype = jnp.dtype(matmul_dtype)  # intermediate group outputs stay narrow
    for g, group in enumerate(groups):
        out_dtype = x.dtype if g == len(groups) - 1 else inter_dtype
        try:
            h = _call_group(h, group, tm, out_dtype, matmul_dtype,
                            single_buffer_weights=True)
        except Exception:
            # Fallback if single-buffered constant blocks are unsupported here.
            h = _call_group(h, group, tm, out_dtype, matmul_dtype,
                            single_buffer_weights=False)

    return h[:B, : dims[-1]]


class Encoder:
    """JAX/Pallas port of the PyTorch Encoder.

    encoder_shape: sizes of the input / intermediate layers.
    hidden_dim:    latent dimension (appended as the final layer size).
    matmul_dtype:  MXU operand dtype (default bf16; accumulation is always f32).
    Activation is fixed to SiLU (the PyTorch default when activation=None).
    # TODO(synk): arbitrary user-supplied activation functions are not plumbed
    # through the fused kernel; SiLU (the module default) is implemented.
    """

    def __init__(self, encoder_shape, hidden_dim, key, matmul_dtype=jnp.bfloat16):
        self.encoder_shape = (*encoder_shape, hidden_dim)
        self.hidden_dim = hidden_dim
        self.matmul_dtype = jnp.dtype(matmul_dtype)

        sizes = self.encoder_shape
        self.params = []          # unpadded f32 (reference / export)
        self.padded_params = []   # output-dim 128-padded, weights pre-cast once
        for i in range(len(sizes) - 1):
            key, wk, bk = jax.random.split(key, 3)
            fan_in, fan_out = sizes[i], sizes[i + 1]
            # torch.nn.Linear-style uniform(-1/sqrt(fan_in), 1/sqrt(fan_in)) init.
            bound = 1.0 / float(fan_in) ** 0.5
            w = jax.random.uniform(wk, (fan_in, fan_out), jnp.float32, -bound, bound)
            b = jax.random.uniform(bk, (fan_out,), jnp.float32, -bound, bound)
            self.params.append((w, b))

            # Rows: layer 0 keeps the true input width (x is fed unpadded);
            # deeper layers receive the previous layer's 128-padded activations.
            rows = fan_in if i == 0 else _round_up(fan_in, _LANE)
            cols = _round_up(fan_out, _LANE)
            w_pad = jnp.zeros((rows, cols), jnp.float32).at[:fan_in, :fan_out].set(w)
            b_pad = jnp.zeros((1, cols), jnp.float32).at[0, :fan_out].set(b)
            self.padded_params.append(
                (w_pad.astype(self.matmul_dtype), b_pad)   # bias stays f32
            )

    def __call__(self, x: jax.Array) -> jax.Array:
        return fused_encoder_forward(
            x, self.padded_params, self.encoder_shape, matmul_dtype=self.matmul_dtype
        )


def _reference_forward(x, params, matmul_dtype=jnp.float32):
    """Pure-JAX reference (mirrors the kernel's operand-dtype handling)."""
    h = x
    for w, b in params:
        y = jnp.dot(h.astype(matmul_dtype), w.astype(matmul_dtype),
                    preferred_element_type=jnp.float32) + b
        h = y * jax.nn.sigmoid(y)
    return h


if __name__ == "__main__":
    key = jax.random.PRNGKey(0)
    key, xk, pk = jax.random.split(key, 3)

    batch = 8
    encoder_shape = (32, 64)   # input dim 32, one intermediate layer of 64
    hidden_dim = 16            # latent dim

    x = jax.random.normal(xk, (batch, encoder_shape[0]), jnp.float32)

    # f32 debug mode: tight check against the pure-JAX reference.
    enc_f32 = Encoder(encoder_shape, hidden_dim, pk, matmul_dtype=jnp.float32)
    out_f32 = jax.block_until_ready(enc_f32(x))
    ref_f32 = _reference_forward(x, enc_f32.params)
    assert out_f32.shape == (batch, hidden_dim), out_f32.shape
    assert jnp.allclose(out_f32, ref_f32, atol=1e-4, rtol=1e-4), "f32 mismatch"

    # Default mode (bf16 MXU operands, f32 accumulation): looser check vs a
    # bf16-cast reference (same params via the same key).
    enc_bf16 = Encoder(encoder_shape, hidden_dim, pk)
    out_bf16 = jax.block_until_ready(enc_bf16(x))
    ref_bf16 = _reference_forward(x, enc_bf16.params, matmul_dtype=jnp.bfloat16)
    assert out_bf16.shape == (batch, hidden_dim), out_bf16.shape
    assert jnp.allclose(out_bf16, ref_bf16, atol=2e-2, rtol=2e-2), "bf16 mismatch"

    print("KERNEL_OK")
</pallas_src>

<mosaic_0001>
module attributes {stable_mosaic.version = 11 : i64} {
  func.func @_fused_group_kernel(%arg0: i32, %arg1: memref<8x32xf32, #tpu.memory_space<vmem>>, %arg2: memref<32x128xf32, #tpu.memory_space<vmem>>, %arg3: memref<1x128xf32, #tpu.memory_space<vmem>>, %arg4: memref<128x128xf32, #tpu.memory_space<vmem>>, %arg5: memref<1x128xf32, #tpu.memory_space<vmem>>, %arg6: memref<8x128xf32, #tpu.memory_space<vmem>>) attributes {dimension_semantics = [#tpu.dimension_semantics<parallel>], iteration_bounds = array<i64: 1>, scalar_prefetch = 0 : i64, scratch_operands = 0 : i64, tpu.core_type = #tpu.core_type<tc>, window_params = [{transform_indices = @transform_0, window_bounds = array<i64: 8, 32>}, {pipeline_mode = #tpu.pipeline_mode<synchronous>, transform_indices = @transform_1, window_bounds = array<i64: 32, 128>}, {pipeline_mode = #tpu.pipeline_mode<synchronous>, transform_indices = @transform_2, window_bounds = array<i64: 1, 128>}, {pipeline_mode = #tpu.pipeline_mode<synchronous>, transform_indices = @transform_3, window_bounds = array<i64: 128, 128>}, {pipeline_mode = #tpu.pipeline_mode<synchronous>, transform_indices = @transform_4, window_bounds = array<i64: 1, 128>}, {transform_indices = @transform_5, window_bounds = array<i64: 8, 128>}]} {
    %c0 = arith.constant 0 : index
    %c0_0 = arith.constant 0 : index
    %0 = vector.load %arg1[%c0, %c0_0] : memref<8x32xf32, #tpu.memory_space<vmem>>, vector<8x32xf32>
    %c0_1 = arith.constant 0 : index
    %c0_2 = arith.constant 0 : index
    %1 = vector.load %arg2[%c0_1, %c0_2] : memref<32x128xf32, #tpu.memory_space<vmem>>, vector<32x128xf32>
    %c0_3 = arith.constant 0 : index
    %c0_4 = arith.constant 0 : index
    %2 = vector.load %arg3[%c0_3, %c0_4] : memref<1x128xf32, #tpu.memory_space<vmem>>, vector<1x128xf32>
    %cst = arith.constant dense<0.000000e+00> : vector<8x128xf32>
    %3 = tpu.matmul %0, %1, %cst {dimension_numbers = #tpu.dot_dimension_numbers<[1], [0], [0], [1], [0, 0, 1, 1], [], []>} : vector<8x32xf32>, vector<32x128xf32>, vector<8x128xf32> -> vector<8x128xf32>
    %4 = vector.broadcast %2 : vector<1x128xf32> to vector<8x128xf32>
    %5 = arith.addf %3, %4 : vector<8x128xf32>
    %6 = arith.negf %5 : vector<8x128xf32>
    %7 = math.exp %6 : vector<8x128xf32>
    %cst_5 = arith.constant 1.000000e+00 : f32
    %8 = vector.broadcast %cst_5 : f32 to vector<8x128xf32>
    %9 = arith.addf %8, %7 : vector<8x128xf32>
    %10 = arith.divf %8, %9 : vector<8x128xf32>
    %11 = arith.mulf %5, %10 : vector<8x128xf32>
    %c0_6 = arith.constant 0 : index
    %c0_7 = arith.constant 0 : index
    %12 = vector.load %arg4[%c0_6, %c0_7] : memref<128x128xf32, #tpu.memory_space<vmem>>, vector<128x128xf32>
    %c0_8 = arith.constant 0 : index
    %c0_9 = arith.constant 0 : index
    %13 = vector.load %arg5[%c0_8, %c0_9] : memref<1x128xf32, #tpu.memory_space<vmem>>, vector<1x128xf32>
    %cst_10 = arith.constant dense<0.000000e+00> : vector<8x128xf32>
    %14 = tpu.matmul %11, %12, %cst_10 {dimension_numbers = #tpu.dot_dimension_numbers<[1], [0], [0], [1], [0, 0, 1, 1], [], []>} : vector<8x128xf32>, vector<128x128xf32>, vector<8x128xf32> -> vector<8x128xf32>
    %15 = vector.broadcast %13 : vector<1x128xf32> to vector<8x128xf32>
    %16 = arith.addf %14, %15 : vector<8x128xf32>
    %17 = arith.negf %16 : vector<8x128xf32>
    %18 = math.exp %17 : vector<8x128xf32>
    %cst_11 = arith.constant 1.000000e+00 : f32
    %19 = vector.broadcast %cst_11 : f32 to vector<8x128xf32>
    %20 = arith.addf %19, %18 : vector<8x128xf32>
    %21 = arith.divf %19, %20 : vector<8x128xf32>
    %22 = arith.mulf %16, %21 : vector<8x128xf32>
    %c0_12 = arith.constant 0 : index
    %c0_13 = arith.constant 0 : index
    %23 = vector.load %arg6[%c0_12, %c0_13] : memref<8x128xf32, #tpu.memory_space<vmem>>, vector<8x128xf32>
    tpu.vector_store %arg6[%c0_12, %c0_13], %22 {strides = array<i32>} : memref<8x128xf32, #tpu.memory_space<vmem>>, vector<8x128xf32>,
    return
  }
  func.func @transform_0(%arg0: i32) -> (i32, i32) {
    %c0_i32 = arith.constant 0 : i32
    %c0_i32_0 = arith.constant 0 : i32
    return %arg0, %c0_i32 : i32, i32
  }
  func.func @transform_1(%arg0: i32) -> (i32, i32) {
    %c0_i32 = arith.constant 0 : i32
    %c0_i32_0 = arith.constant 0 : i32
    %c0_i32_1 = arith.constant 0 : i32
    return %c0_i32, %c0_i32_0 : i32, i32
  }
  func.func @transform_2(%arg0: i32) -> (i32, i32) {
    %c0_i32 = arith.constant 0 : i32
    %c0_i32_0 = arith.constant 0 : i32
    %c0_i32_1 = arith.constant 0 : i32
    return %c0_i32, %c0_i32_0 : i32, i32
  }
  func.func @transform_3(%arg0: i32) -> (i32, i32) {
    %c0_i32 = arith.constant 0 : i32
    %c0_i32_0 = arith.constant 0 : i32
    %c0_i32_1 = arith.constant 0 : i32
    return %c0_i32, %c0_i32_0 : i32, i32
  }
  func.func @transform_4(%arg0: i32) -> (i32, i32) {
    %c0_i32 = arith.constant 0 : i32
    %c0_i32_0 = arith.constant 0 : i32
    %c0_i32_1 = arith.constant 0 : i32
    return %c0_i32, %c0_i32_0 : i32, i32
  }
  func.func @transform_5(%arg0: i32) -> (i32, i32) {
    %c0_i32 = arith.constant 0 : i32
    %c0_i32_0 = arith.constant 0 : i32
    return %arg0, %c0_i32 : i32, i32
  }
}

module attributes {stable_mosaic.version = 11 : i64} {
  func.func @_fused_group_kernel(%arg0: i32, %arg1: memref<8x32xf32, #tpu.memory_space<vmem>>, %arg2: memref<32x128xf32, #tpu.memory_space<vmem>>, %arg3: memref<1x128xf32, #tpu.memory_space<vmem>>, %arg4: memref<128x128xf32, #tpu.memory_space<vmem>>, %arg5: memref<1x128xf32, #tpu.memory_space<vmem>>, %arg6: memref<8x128xf32, #tpu.memory_space<vmem>>) attributes {dimension_semantics = [#tpu.dimension_semantics<parallel>], iteration_bounds = array<i64: 1>, scalar_prefetch = 0 : i64, scratch_operands = 0 : i64, tpu.core_type = #tpu.core_type<tc>, window_params = [{transform_indices = @transform_0, window_bounds = array<i64: 8, 32>}, {pipeline_mode = #tpu.pipeline_mode<synchronous>, transform_indices = @transform_1, window_bounds = array<i64: 32, 128>}, {pipeline_mode = #tpu.pipeline_mode<synchronous>, transform_indices = @transform_2, window_bounds = array<i64: 1, 128>}, {pipeline_mode = #tpu.pipeline_mode<synchronous>, transform_indices = @transform_3, window_bounds = array<i64: 128, 128>}, {pipeline_mode = #tpu.pipeline_mode<synchronous>, transform_indices = @transform_4, window_bounds = array<i64: 1, 128>}, {transform_indices = @transform_5, window_bounds = array<i64: 8, 128>}]} {
    %c0 = arith.constant 0 : index
    %c0_0 = arith.constant 0 : index
    %0 = vector.load %arg1[%c0, %c0_0] : memref<8x32xf32, #tpu.memory_space<vmem>>, vector<8x32xf32>
    %c0_1 = arith.constant 0 : index
    %c0_2 = arith.constant 0 : index
    %1 = vector.load %arg2[%c0_1, %c0_2] : memref<32x128xf32, #tpu.memory_space<vmem>>, vector<32x128xf32>
    %c0_3 = arith.constant 0 : index
    %c0_4 = arith.constant 0 : index
    %2 = vector.load %arg3[%c0_3, %c0_4] : memref<1x128xf32, #tpu.memory_space<vmem>>, vector<1x128xf32>
    %cst = arith.constant dense<0.000000e+00> : vector<8x128xf32>
    %3 = tpu.matmul %0, %1, %cst {dimension_numbers = #tpu.dot_dimension_numbers<[1], [0], [0], [1], [0, 0, 1, 1], [], []>} : vector<8x32xf32>, vector<32x128xf32>, vector<8x128xf32> -> vector<8x128xf32>
    %4 = vector.broadcast %2 : vector<1x128xf32> to vector<8x128xf32>
    %5 = arith.addf %3, %4 : vector<8x128xf32>
    %6 = arith.negf %5 : vector<8x128xf32>
    %7 = math.exp %6 : vector<8x128xf32>
    %cst_5 = arith.constant 1.000000e+00 : f32
    %8 = vector.broadcast %cst_5 : f32 to vector<8x128xf32>
    %9 = arith.addf %8, %7 : vector<8x128xf32>
    %10 = arith.divf %8, %9 : vector<8x128xf32>
    %11 = arith.mulf %5, %10 : vector<8x128xf32>
    %c0_6 = arith.constant 0 : index
    %c0_7 = arith.constant 0 : index
    %12 = vector.load %arg4[%c0_6, %c0_7] : memref<128x128xf32, #tpu.memory_space<vmem>>, vector<128x128xf32>
    %c0_8 = arith.constant 0 : index
    %c0_9 = arith.constant 0 : index
    %13 = vector.load %arg5[%c0_8, %c0_9] : memref<1x128xf32, #tpu.memory_space<vmem>>, vector<1x128xf32>
    %cst_10 = arith.constant dense<0.000000e+00> : vector<8x128xf32>
    %14 = tpu.matmul %11, %12, %cst_10 {dimension_numbers = #tpu.dot_dimension_numbers<[1], [0], [0], [1], [0, 0, 1, 1], [], []>} : vector<8x128xf32>, vector<128x128xf32>, vector<8x128xf32> -> vector<8x128xf32>
    %15 = vector.broadcast %13 : vector<1x128xf32> to vector<8x128xf32>
    %16 = arith.addf %14, %15 : vector<8x128xf32>
    %17 = arith.negf %16 : vector<8x128xf32>
    %18 = math.exp %17 : vector<8x128xf32>
    %cst_11 = arith.constant 1.000000e+00 : f32
    %19 = vector.broadcast %cst_11 : f32 to vector<8x128xf32>
    %20 = arith.addf %19, %18 : vector<8x128xf32>
    %21 = arith.divf %19, %20 : vector<8x128xf32>
    %22 = arith.mulf %16, %21 : vector<8x128xf32>
    %c0_12 = arith.constant 0 : index
    %c0_13 = arith.constant 0 : index
    %23 = vector.load %arg6[%c0_12, %c0_13] : memref<8x128xf32, #tpu.memory_space<vmem>>, vector<8x128xf32>
    tpu.vector_store %arg6[%c0_12, %c0_13], %22 {strides = array<i32>} : memref<8x128xf32, #tpu.memory_space<vmem>>, vector<8x128xf32>,
    return
  }
  func.func @transform_0(%arg0: i32) -> (i32, i32) {
    %c0_i32 = arith.constant 0 : i32
    %c0_i32_0 = arith.constant 0 : i32
    return %arg0, %c0_i32 : i32, i32
  }
  func.func @transform_1(%arg0: i32) -> (i32, i32) {
    %c0_i32 = arith.constant 0 : i32
    %c0_i32_0 = arith.constant 0 : i32
    %c0_i32_1 = arith.constant 0 : i32
    return %c0_i32, %c0_i32_0 : i32, i32
  }
  func.func @transform_2(%arg0: i32) -> (i32, i32) {
    %c0_i32 = arith.constant 0 : i32
    %c0_i32_0 = arith.constant 0 : i32
    %c0_i32_1 = arith.constant 0 : i32
    return %c0_i32, %c0_i32_0 : i32, i32
  }
  func.func @transform_3(%arg0: i32) -> (i32, i32) {
    %c0_i32 = arith.constant 0 : i32
    %c0_i32_0 = arith.constant 0 : i32
    %c0_i32_1 = arith.constant 0 : i32
    return %c0_i32, %c0_i32_0 : i32, i32
  }
  func.func @transform_4(%arg0: i32) -> (i32, i32) {
    %c0_i32 = arith.constant 0 : i32
    %c0_i32_0 = arith.constant 0 : i32
    %c0_i32_1 = arith.constant 0 : i32
    return %c0_i32, %c0_i32_0 : i32, i32
  }
  func.func @transform_5(%arg0: i32) -> (i32, i32) {
    %c0_i32 = arith.constant 0 : i32
    %c0_i32_0 = arith.constant 0 : i32
    return %arg0, %c0_i32 : i32, i32
  }
}

</mosaic_0001>

<llo_original>
// kernel: tpu_custom_call.1
$region0: #{tpu_custom_call.1}
  #allocation0 [shape = 'u32[]', space=smem, size = 0x4, offset = 0x4, fixed_abs, tag = 'smem constant byte address 0x4 - core index']
  #allocation1 [shape = 'u32[144,128]{1,0:T(1,128)}', space=vmem, size = 0x12000, scoped, tag = 'internal scratch']
  %s0 = inlined_call_operand.hbm [shape: f32[8,32], index: 0, kind: input, shape index: {}]
  %s1 = inlined_call_operand.hbm [shape: f32[32,128], index: 1, kind: input, shape index: {}]
  %s2 = inlined_call_operand.vmem [shape: f32[1,128], index: 2, kind: input, shape index: {}]
  %s3 = inlined_call_operand.hbm [shape: f32[128,128], index: 3, kind: input, shape index: {}]
  %s4 = inlined_call_operand.vmem [shape: f32[1,128], index: 4, kind: input, shape index: {}]
  %s5 = inlined_call_operand.hbm [shape: f32[8,128], index: 5, kind: output, shape index: {}]
  %s6 = sld [smem:[#allocation0]]
  $region42: #{tpu_custom_call.1} parent=0
    _
  %s8 = ssub.s32 1, %s6
  %s9 = scalar_select 0, %s8, %s6
  $region1: #{tpu_custom_call.1} parent=0
    #allocation2 [shape = 'u8[4096]{0}', space=vmem, size = 0x1000, scoped, tag = 'input window, operand 0, single buffered']
    #allocation3 [shape = 's32[1]{0}', space=sflag, size = 0x4, scoped, tag = 'scoped memory for tpu_custom_call.1']
    #allocation4 [shape = 's32[1]{0}', space=sflag, size = 0x4, scoped, tag = 'scoped memory for tpu_custom_call.1']
    #allocation5 [shape = 'u8[16384]{0}', space=vmem, size = 0x4000, scoped, tag = 'input window, operand 1, single buffered']
    #allocation6 [shape = 's32[1]{0}', space=sflag, size = 0x4, scoped, tag = 'scoped memory for tpu_custom_call.1']
    #allocation7 [shape = 'u8[65536]{0}', space=vmem, size = 0x10000, scoped, tag = 'input window, operand 3, single buffered']
    #allocation8 [shape = 'u8[4096]{0}', space=vmem, size = 0x1000, scoped, tag = 'output window, operand 0, single buffered']
    %10 = vsyncpa [#allocation3], 0
    %11 = vsyncpa [#allocation6], 0
    %12 = vsyncpa [#allocation4], 0
    // Predicated region
    $region2: #{tpu_custom_call.1} parent=1 // pred_check
      _
    $region3: #{tpu_custom_call.1} parent=1 // pred_check_branch
      %14 = sbr.rel (0) target = $region5
    $region4: #{tpu_custom_call.1} parent=1 // pred_region
      %s16 = ssub.s32 128, 128
      %17 = vsyncadd [#allocation3], %s16
      %s19 = sshll.u32 [#allocation2], 4
      %s20 = int_to_ptr.vmem [resolvable:$true] %s19
      %22 = dma.hbm_to_vmem [thread:$0]  %s0, 128, %s20, [#allocation3]
    $region5: #{tpu_custom_call.1} parent=1 // pred_fallthru
      _
    // Predicated region
    $region6: #{tpu_custom_call.1} parent=1 // pred_check
      _
    $region7: #{tpu_custom_call.1} parent=1 // pred_check_branch
      %24 = sbr.rel (0) target = $region9
    $region8: #{tpu_custom_call.1} parent=1 // pred_region
      %s26 = ssub.s32 512, 512
      %27 = vsyncadd [#allocation6], %s26
      %s28 = sshll.u32 [#allocation5], 4
      %s29 = int_to_ptr.vmem [resolvable:$true] %s28
      %34 = dma.hbm_to_vmem [thread:$0]  %s1, 512, %s29, [#allocation6], 128, 128, 8
    $region9: #{tpu_custom_call.1} parent=1 // pred_fallthru
      _
    // Predicated region
    $region10: #{tpu_custom_call.1} parent=1 // pred_check
      _
    $region11: #{tpu_custom_call.1} parent=1 // pred_check_branch
      %36 = sbr.rel (0) target = $region13
    $region12: #{tpu_custom_call.1} parent=1 // pred_region
      _
    $region13: #{tpu_custom_call.1} parent=1 // pred_fallthru
      _
    // Predicated region
    $region14: #{tpu_custom_call.1} parent=1 // pred_check
      _
    $region15: #{tpu_custom_call.1} parent=1 // pred_check_branch
      %38 = sbr.rel (0) target = $region17
    $region16: #{tpu_custom_call.1} parent=1 // pred_region
      %s40 = ssub.s32 2048, 2048
      %41 = vsyncadd [#allocation6], %s40
      %s42 = sshll.u32 [#allocation7], 4
      %s43 = int_to_ptr.vmem [resolvable:$true] %s42
      %48 = dma.hbm_to_vmem [thread:$0]  %s3, 2048, %s43, [#allocation6], 128, 128, 8
    $region17: #{tpu_custom_call.1} parent=1 // pred_fallthru
      _
    // Predicated region
    $region18: #{tpu_custom_call.1} parent=1 // pred_check
      _
    $region19: #{tpu_custom_call.1} parent=1 // pred_check_branch
      %50 = sbr.rel (0) target = $region21
    $region20: #{tpu_custom_call.1} parent=1 // pred_region
      _
    $region21: #{tpu_custom_call.1} parent=1 // pred_fallthru
      _
    // Predicated region
    $region22: #{tpu_custom_call.1} parent=1 // pred_check
      _
    $region23: #{tpu_custom_call.1} parent=1 // pred_check_branch
      %52 = sbr.rel (0) target = $region25
    $region24: #{tpu_custom_call.1} parent=1 // pred_region
      %53 = dma.done [#allocation3], 128
    $region25: #{tpu_custom_call.1} parent=1 // pred_fallthru
      _
    // Predicated region
    $region26: #{tpu_custom_call.1} parent=1 // pred_check
      _
    $region27: #{tpu_custom_call.1} parent=1 // pred_check_branch
      %55 = sbr.rel (0) target = $region29
    $region28: #{tpu_custom_call.1} parent=1 // pred_region
      %56 = dma.done [#allocation6], 512
    $region29: #{tpu_custom_call.1} parent=1 // pred_fallthru
      _
    // Predicated region
    $region30: #{tpu_custom_call.1} parent=1 // pred_check
      _
    $region31: #{tpu_custom_call.1} parent=1 // pred_check_branch
      %58 = sbr.rel (0) target = $region33
    $region32: #{tpu_custom_call.1} parent=1 // pred_region
      %59 = dma.done [#allocation6], 2048
    $region33: #{tpu_custom_call.1} parent=1 // pred_fallthru
      _
    %v60 = vld [vmem:[#allocation2] sm:$0xff]
    %v61 = vld [vmem:[#allocation5] sm:$0xff]
    %v62 = vld [vmem:[#allocation5 + $0x8] sm:$0xff]
    %v63 = vld [vmem:[#allocation5 + $0x10] sm:$0xff]
    %v64 = vld [vmem:[#allocation5 + $0x18] sm:$0xff]
    %v65 = vld [vmem:[%s2] sm:$0x1]
    %v67 = vlaneseq
    %v68 = vshrl.u32 %v67, 7
    %v69 = vsub.s32 0, %v68
    %v70 = vrot.slane %v65, %v69
    %vm72 = vcmask 261120
    %v74 = vsel %vm72, %v60, 0
    %76 = vmatprep.subr.mxu0 0.0
    %77 = vmatpush1.msra.mxu0 0.0
    %78 = vmatprep.subr.mxu0 0.0
    %79 = vmatpush1.msra.mxu0 0.0
    %80 = vmatprep.subr.mxu0 0.0
    %81 = vmatpush1.msra.mxu0 0.0
    %82 = vmatprep.subr.mxu0 0.0
    %83 = vmatpush1.msra.mxu0 0.0
    %84 = vmatprep.subr.mxu0 0.0
    %85 = vmatpush1.msra.mxu0 0.0
    %86 = vmatprep.subr.mxu0 0.0
    %87 = vmatpush1.msra.mxu0 0.0
    %88 = vmatprep.subr.mxu0 0.0
    %89 = vmatpush1.msra.mxu0 0.0
    %90 = vmatprep.subr.mxu0 0.0
    %91 = vmatpush1.msra.mxu0 0.0
    %92 = vmatprep.subr.mxu0 0.0
    %93 = vmatpush1.msra.mxu0 0.0
    %94 = vmatprep.subr.mxu0 0.0
    %95 = vmatpush1.msra.mxu0 0.0
    %96 = vmatprep.subr.mxu0 0.0
    %97 = vmatpush1.msra.mxu0 0.0
    %98 = vmatprep.subr.mxu0 0.0
    %99 = vmatpush1.msra.mxu0 0.0
    %100 = vmatprep.subr.mxu0 0.0
    %101 = vmatpush1.msra.mxu0 %v64
    %102 = vmatprep.subr.mxu0 0.0
    %103 = vmatpush1.msra.mxu0 %v63
    %104 = vmatprep.subr.mxu0 0.0
    %105 = vmatpush1.msra.mxu0 %v62
    %106 = vmatprep.subr.mxu0 0.0
    %107 = vmatpush1.msra.mxu0 %v61
    %108 = vmatprep.subr.mxu0 0.0
    %109 = vmatpush2.msra.mxu0 0.0
    %110 = vmatprep.subr.mxu0 0.0
    %111 = vmatpush2.msra.mxu0 0.0
    %112 = vmatprep.subr.mxu0 0.0
    %113 = vmatpush2.msra.mxu0 0.0
    %114 = vmatprep.subr.mxu0 0.0
    %115 = vmatpush2.msra.mxu0 0.0
    %116 = vmatprep.subr.mxu0 0.0
    %117 = vmatpush2.msra.mxu0 0.0
    %118 = vmatprep.subr.mxu0 0.0
    %119 = vmatpush2.msra.mxu0 0.0
    %120 = vmatprep.subr.mxu0 0.0
    %121 = vmatpush2.msra.mxu0 0.0
    %122 = vmatprep.subr.mxu0 0.0
    %123 = vmatpush2.msra.mxu0 0.0
    %124 = vmatprep.subr.mxu0 0.0
    %125 = vmatpush2.msra.mxu0 0.0
    %126 = vmatprep.subr.mxu0 0.0
    %127 = vmatpush2.msra.mxu0 0.0
    %128 = vmatprep.subr.mxu0 0.0
    %129 = vmatpush2.msra.mxu0 0.0
    %130 = vmatprep.subr.mxu0 0.0
    %131 = vmatpush2.msra.mxu0 0.0
    %132 = vmatprep.subr.mxu0 0.0
    %133 = vmatpush2.msra.mxu0 0.0
    %134 = vmatprep.subr.mxu0 0.0
    %135 = vmatpush2.msra.mxu0 0.0
    %136 = vmatprep.subr.mxu0 0.0
    %137 = vmatpush2.msra.mxu0 0.0
    %138 = vmatprep.subr.mxu0 0.0
    %139 = vmatpush2.msra.mxu0 0.0
    %140 = vmatprep.mubr.f32.mxu0 0.0
    %141 = vmatmul.mubr.f32.gmra.mxu0 %v74
    %v142 = vpop.f32.mrf.mxu0
    %v143 = vadd.f32 %v70, %v142
    %v144 = vpop.f32.mrf.mxu0
    %145 = vdwg.mxu0
    %v146 = vxor.u32 %v143, 2147483648
    %v147 = vmul.f32 %v146, 1.442695
    %v148 = vpow.pop %v147
    %v149 = vadd.f32 %v148, 1.0
    %v150 = vrcp.pop %v149
    %v151 = vmul.f32 1.0, %v150
    %v152 = vmul.f32 %v143, %v151
    %v153 = vld [vmem:[#allocation7] sm:$0xff]
    %v154 = vld [vmem:[#allocation7 + $0x8] sm:$0xff]
    %v155 = vld [vmem:[#allocation7 + $0x10] sm:$0xff]
    %v156 = vld [vmem:[#allocation7 + $0x18] sm:$0xff]
    %v157 = vld [vmem:[#allocation7 + $0x20] sm:$0xff]
    %v158 = vld [vmem:[#allocation7 + $0x28] sm:$0xff]
    %v159 = vld [vmem:[#allocation7 + $0x30] sm:$0xff]
    %v160 = vld [vmem:[#allocation7 + $0x38] sm:$0xff]
    %v161 = vld [vmem:[#allocation7 + $0x40] sm:$0xff]
    %v162 = vld [vmem:[#allocation7 + $0x48] sm:$0xff]
    %v163 = vld [vmem:[#allocation7 + $0x50] sm:$0xff]
    %v164 = vld [vmem:[#allocation7 + $0x58] sm:$0xff]
    %v165 = vld [vmem:[#allocation7 + $0x60] sm:$0xff]
    %v166 = vld [vmem:[#allocation7 + $0x68] sm:$0xff]
    %v167 = vld [vmem:[#allocation7 + $0x70] sm:$0xff]
    %v168 = vld [vmem:[#allocation7 + $0x78] sm:$0xff]
    %v169 = vld [vmem:[%s4] sm:$0x1]
    %v171 = vlaneseq
    %v172 = vshrl.u32 %v171, 7
    %v173 = vsub.s32 0, %v172
    %v174 = vrot.slane %v169, %v173
    %176 = vmatprep.subr.mxu0 0.0
    %177 = vmatpush1.msra.mxu0 %v168
    %178 = vmatprep.subr.mxu0 0.0
    %179 = vmatpush1.msra.mxu0 %v167
    %180 = vmatprep.subr.mxu0 0.0
    %181 = vmatpush1.msra.mxu0 %v166
    %182 = vmatprep.subr.mxu0 0.0
    %183 = vmatpush1.msra.mxu0 %v165
    %184 = vmatprep.subr.mxu0 0.0
    %185 = vmatpush1.msra.mxu0 %v164
    %186 = vmatprep.subr.mxu0 0.0
    %187 = vmatpush1.msra.mxu0 %v163
    %188 = vmatprep.subr.mxu0 0.0
    %189 = vmatpush1.msra.mxu0 %v162
    %190 = vmatprep.subr.mxu0 0.0
    %191 = vmatpush1.msra.mxu0 %v161
    %192 = vmatprep.subr.mxu0 0.0
    %193 = vmatpush1.msra.mxu0 %v160
    %194 = vmatprep.subr.mxu0 0.0
    %195 = vmatpush1.msra.mxu0 %v159
    %196 = vmatprep.subr.mxu0 0.0
    %197 = vmatpush1.msra.mxu0 %v158
    %198 = vmatprep.subr.mxu0 0.0
    %199 = vmatpush1.msra.mxu0 %v157
    %200 = vmatprep.subr.mxu0 0.0
    %201 = vmatpush1.msra.mxu0 %v156
    %202 = vmatprep.subr.mxu0 0.0
    %203 = vmatpush1.msra.mxu0 %v155
    %204 = vmatprep.subr.mxu0 0.0
    %205 = vmatpush1.msra.mxu0 %v154
    %206 = vmatprep.subr.mxu0 0.0
    %207 = vmatpush1.msra.mxu0 %v153
    %208 = vmatprep.subr.mxu0 0.0
    %209 = vmatpush2.msra.mxu0 0.0
    %210 = vmatprep.subr.mxu0 0.0
    %211 = vmatpush2.msra.mxu0 0.0
    %212 = vmatprep.subr.mxu0 0.0
    %213 = vmatpush2.msra.mxu0 0.0
    %214 = vmatprep.subr.mxu0 0.0
    %215 = vmatpush2.msra.mxu0 0.0
    %216 = vmatprep.subr.mxu0 0.0
    %217 = vmatpush2.msra.mxu0 0.0
    %218 = vmatprep.subr.mxu0 0.0
    %219 = vmatpush2.msra.mxu0 0.0
    %220 = vmatprep.subr.mxu0 0.0
    %221 = vmatpush2.msra.mxu0 0.0
    %222 = vmatprep.subr.mxu0 0.0
    %223 = vmatpush2.msra.mxu0 0.0
    %224 = vmatprep.subr.mxu0 0.0
    %225 = vmatpush2.msra.mxu0 0.0
    %226 = vmatprep.subr.mxu0 0.0
    %227 = vmatpush2.msra.mxu0 0.0
    %228 = vmatprep.subr.mxu0 0.0
    %229 = vmatpush2.msra.mxu0 0.0
    %230 = vmatprep.subr.mxu0 0.0
    %231 = vmatpush2.msra.mxu0 0.0
    %232 = vmatprep.subr.mxu0 0.0
    %233 = vmatpush2.msra.mxu0 0.0
    %234 = vmatprep.subr.mxu0 0.0
    %235 = vmatpush2.msra.mxu0 0.0
    %236 = vmatprep.subr.mxu0 0.0
    %237 = vmatpush2.msra.mxu0 0.0
    %238 = vmatprep.subr.mxu0 0.0
    %239 = vmatpush2.msra.mxu0 0.0
    %240 = vmatprep.mubr.f32.mxu0 0.0
    %241 = vmatmul.mubr.f32.gmra.mxu0 %v152
    %v242 = vpop.f32.mrf.mxu0
    %v243 = vadd.f32 %v174, %v242
    %v244 = vpop.f32.mrf.mxu0
    %245 = vdwg.mxu0
    %v246 = vxor.u32 %v243, 2147483648
    %v247 = vmul.f32 %v246, 1.442695
    %v248 = vpow.pop %v247
    %v249 = vadd.f32 %v248, 1.0
    %v250 = vrcp.pop %v249
    %v251 = vmul.f32 1.0, %v250
    %v252 = vmul.f32 %v243, %v251
    %253 = vst [vmem:[#allocation8] sm:$0xff] %v252
    // Predicated region
    $region34: #{tpu_custom_call.1} parent=1 // pred_check
      _
    $region35: #{tpu_custom_call.1} parent=1 // pred_check_branch
      %255 = sbr.rel (0) target = $region37
    $region36: #{tpu_custom_call.1} parent=1 // pred_region
      %s257 = ssub.s32 128, 128
      %258 = vsyncadd [#allocation4], %s257
      %s260 = sshll.u32 [#allocation8], 4
      %s261 = int_to_ptr.vmem [resolvable:$true] %s260
      %263 = dma.vmem_to_hbm [thread:$0]  %s261, 128, %s5, [#allocation4]
    $region37: #{tpu_custom_call.1} parent=1 // pred_fallthru
      _
    // Predicated region
    $region38: #{tpu_custom_call.1} parent=1 // pred_check
      _
    $region39: #{tpu_custom_call.1} parent=1 // pred_check_branch
      %265 = sbr.rel (0) target = $region41
    $region40: #{tpu_custom_call.1} parent=1 // pred_region
      %266 = dma.done [#allocation4], 128
    $region41: #{tpu_custom_call.1} parent=1 // pred_fallthru
      _
    %267 = vsyncpa [#allocation3], 1
    %268 = vsyncpa [#allocation6], 1
    %269 = vsyncpa [#allocation4], 1

// kernel: tpu_custom_call.1
$region0: #{tpu_custom_call.1}
  #allocation0 [shape = 'u32[]', space=smem, size = 0x4, offset = 0x4, fixed_abs, tag = 'smem constant byte address 0x4 - core index']
  #allocation1 [shape = 'u32[144,128]{1,0:T(1,128)}', space=vmem, size = 0x12000, scoped, tag = 'internal scratch']
  %s0 = inlined_call_operand.hbm [shape: f32[8,32], index: 0, kind: input, shape index: {}]
  %s1 = inlined_call_operand.hbm [shape: f32[32,128], index: 1, kind: input, shape index: {}]
  %s2 = inlined_call_operand.vmem [shape: f32[1,128], index: 2, kind: input, shape index: {}]
  %s3 = inlined_call_operand.hbm [shape: f32[128,128], index: 3, kind: input, shape index: {}]
  %s4 = inlined_call_operand.vmem [shape: f32[1,128], index: 4, kind: input, shape index: {}]
  %s5 = inlined_call_operand.hbm [shape: f32[8,128], index: 5, kind: output, shape index: {}]
  %s6 = sld [smem:[#allocation0]]
  $region42: #{tpu_custom_call.1} parent=0
    _
  %s8 = ssub.s32 1, %s6
  %s9 = scalar_select 0, %s8, %s6
  $region1: #{tpu_custom_call.1} parent=0
    #allocation2 [shape = 'u8[4096]{0}', space=vmem, size = 0x1000, scoped, tag = 'input window, operand 0, single buffered']
    #allocation3 [shape = 's32[1]{0}', space=sflag, size = 0x4, scoped, tag = 'scoped memory for tpu_custom_call.1']
    #allocation4 [shape = 's32[1]{0}', space=sflag, size = 0x4, scoped, tag = 'scoped memory for tpu_custom_call.1']
    #allocation5 [shape = 'u8[16384]{0}', space=vmem, size = 0x4000, scoped, tag = 'input window, operand 1, single buffered']
    #allocation6 [shape = 's32[1]{0}', space=sflag, size = 0x4, scoped, tag = 'scoped memory for tpu_custom_call.1']
    #allocation7 [shape = 'u8[65536]{0}', space=vmem, size = 0x10000, scoped, tag = 'input window, operand 3, single buffered']
    #allocation8 [shape = 'u8[4096]{0}', space=vmem, size = 0x1000, scoped, tag = 'output window, operand 0, single buffered']
    %10 = vsyncpa [#allocation3], 0
    %11 = vsyncpa [#allocation6], 0
    %12 = vsyncpa [#allocation4], 0
    // Predicated region
    $region2: #{tpu_custom_call.1} parent=1 // pred_check
      _
    $region3: #{tpu_custom_call.1} parent=1 // pred_check_branch
      %14 = sbr.rel (0) target = $region5
    $region4: #{tpu_custom_call.1} parent=1 // pred_region
      %s16 = ssub.s32 128, 128
      %17 = vsyncadd [#allocation3], %s16
      %s19 = sshll.u32 [#allocation2], 4
      %s20 = int_to_ptr.vmem [resolvable:$true] %s19
      %22 = dma.hbm_to_vmem [thread:$0]  %s0, 128, %s20, [#allocation3]
    $region5: #{tpu_custom_call.1} parent=1 // pred_fallthru
      _
    // Predicated region
    $region6: #{tpu_custom_call.1} parent=1 // pred_check
      _
    $region7: #{tpu_custom_call.1} parent=1 // pred_check_branch
      %24 = sbr.rel (0) target = $region9
    $region8: #{tpu_custom_call.1} parent=1 // pred_region
      %s26 = ssub.s32 512, 512
      %27 = vsyncadd [#allocation6], %s26
      %s28 = sshll.u32 [#allocation5], 4
      %s29 = int_to_ptr.vmem [resolvable:$true] %s28
      %34 = dma.hbm_to_vmem [thread:$0]  %s1, 512, %s29, [#allocation6], 128, 128, 8
    $region9: #{tpu_custom_call.1} parent=1 // pred_fallthru
      _
    // Predicated region
    $region10: #{tpu_custom_call.1} parent=1 // pred_check
      _
    $region11: #{tpu_custom_call.1} parent=1 // pred_check_branch
      %36 = sbr.rel (0) target = $region13
    $region12: #{tpu_custom_call.1} parent=1 // pred_region
      _
    $region13: #{tpu_custom_call.1} parent=1 // pred_fallthru
      _
    // Predicated region
    $region14: #{tpu_custom_call.1} parent=1 // pred_check
      _
    $region15: #{tpu_custom_call.1} parent=1 // pred_check_branch
      %38 = sbr.rel (0) target = $region17
    $region16: #{tpu_custom_call.1} parent=1 // pred_region
      %s40 = ssub.s32 2048, 2048
      %41 = vsyncadd [#allocation6], %s40
      %s42 = sshll.u32 [#allocation7], 4
      %s43 = int_to_ptr.vmem [resolvable:$true] %s42
      %48 = dma.hbm_to_vmem [thread:$0]  %s3, 2048, %s43, [#allocation6], 128, 128, 8
    $region17: #{tpu_custom_call.1} parent=1 // pred_fallthru
      _
    // Predicated region
    $region18: #{tpu_custom_call.1} parent=1 // pred_check
      _
    $region19: #{tpu_custom_call.1} parent=1 // pred_check_branch
      %50 = sbr.rel (0) target = $region21
    $region20: #{tpu_custom_call.1} parent=1 // pred_region
      _
    $region21: #{tpu_custom_call.1} parent=1 // pred_fallthru
      _
    // Predicated region
    $region22: #{tpu_custom_call.1} parent=1 // pred_check
      _
    $region23: #{tpu_custom_call.1} parent=1 // pred_check_branch
      %52 = sbr.rel (0) target = $region25
    $region24: #{tpu_custom_call.1} parent=1 // pred_region
      %53 = dma.done [#allocation3], 128
    $region25: #{tpu_custom_call.1} parent=1 // pred_fallthru
      _
    // Predicated region
    $region26: #{tpu_custom_call.1} parent=1 // pred_check
      _
    $region27: #{tpu_custom_call.1} parent=1 // pred_check_branch
      %55 = sbr.rel (0) target = $region29
    $region28: #{tpu_custom_call.1} parent=1 // pred_region
      %56 = dma.done [#allocation6], 512
    $region29: #{tpu_custom_call.1} parent=1 // pred_fallthru
      _
    // Predicated region
    $region30: #{tpu_custom_call.1} parent=1 // pred_check
      _
    $region31: #{tpu_custom_call.1} parent=1 // pred_check_branch
      %58 = sbr.rel (0) target = $region33
    $region32: #{tpu_custom_call.1} parent=1 // pred_region
      %59 = dma.done [#allocation6], 2048
    $region33: #{tpu_custom_call.1} parent=1 // pred_fallthru
      _
    %v60 = vld [vmem:[#allocation2] sm:$0xff]
    %v61 = vld [vmem:[#allocation5] sm:$0xff]
    %v62 = vld [vmem:[#allocation5 + $0x8] sm:$0xff]
    %v63 = vld [vmem:[#allocation5 + $0x10] sm:$0xff]
    %v64 = vld [vmem:[#allocation5 + $0x18] sm:$0xff]
    %v65 = vld [vmem:[%s2] sm:$0x1]
    %v67 = vlaneseq
    %v68 = vshrl.u32 %v67, 7
    %v69 = vsub.s32 0, %v68
    %v70 = vrot.slane %v65, %v69
    %vm72 = vcmask 261120
    %v74 = vsel %vm72, %v60, 0
    %76 = vmatprep.subr.mxu0 0.0
    %77 = vmatpush1.msra.mxu0 0.0
    %78 = vmatprep.subr.mxu0 0.0
    %79 = vmatpush1.msra.mxu0 0.0
    %80 = vmatprep.subr.mxu0 0.0
    %81 = vmatpush1.msra.mxu0 0.0
    %82 = vmatprep.subr.mxu0 0.0
    %83 = vmatpush1.msra.mxu0 0.0
    %84 = vmatprep.subr.mxu0 0.0
    %85 = vmatpush1.msra.mxu0 0.0
    %86 = vmatprep.subr.mxu0 0.0
    %87 = vmatpush1.msra.mxu0 0.0
    %88 = vmatprep.subr.mxu0 0.0
    %89 = vmatpush1.msra.mxu0 0.0
    %90 = vmatprep.subr.mxu0 0.0
    %91 = vmatpush1.msra.mxu0 0.0
    %92 = vmatprep.subr.mxu0 0.0
    %93 = vmatpush1.msra.mxu0 0.0
    %94 = vmatprep.subr.mxu0 0.0
    %95 = vmatpush1.msra.mxu0 0.0
    %96 = vmatprep.subr.mxu0 0.0
    %97 = vmatpush1.msra.mxu0 0.0
    %98 = vmatprep.subr.mxu0 0.0
    %99 = vmatpush1.msra.mxu0 0.0
    %100 = vmatprep.subr.mxu0 0.0
    %101 = vmatpush1.msra.mxu0 %v64
    %102 = vmatprep.subr.mxu0 0.0
    %103 = vmatpush1.msra.mxu0 %v63
    %104 = vmatprep.subr.mxu0 0.0
    %105 = vmatpush1.msra.mxu0 %v62
    %106 = vmatprep.subr.mxu0 0.0
    %107 = vmatpush1.msra.mxu0 %v61
    %108 = vmatprep.subr.mxu0 0.0
    %109 = vmatpush2.msra.mxu0 0.0
    %110 = vmatprep.subr.mxu0 0.0
    %111 = vmatpush2.msra.mxu0 0.0
    %112 = vmatprep.subr.mxu0 0.0
    %113 = vmatpush2.msra.mxu0 0.0
    %114 = vmatprep.subr.mxu0 0.0
    %115 = vmatpush2.msra.mxu0 0.0
    %116 = vmatprep.subr.mxu0 0.0
    %117 = vmatpush2.msra.mxu0 0.0
    %118 = vmatprep.subr.mxu0 0.0
    %119 = vmatpush2.msra.mxu0 0.0
    %120 = vmatprep.subr.mxu0 0.0
    %121 = vmatpush2.msra.mxu0 0.0
    %122 = vmatprep.subr.mxu0 0.0
    %123 = vmatpush2.msra.mxu0 0.0
    %124 = vmatprep.subr.mxu0 0.0
    %125 = vmatpush2.msra.mxu0 0.0
    %126 = vmatprep.subr.mxu0 0.0
    %127 = vmatpush2.msra.mxu0 0.0
    %128 = vmatprep.subr.mxu0 0.0
    %129 = vmatpush2.msra.mxu0 0.0
    %130 = vmatprep.subr.mxu0 0.0
    %131 = vmatpush2.msra.mxu0 0.0
    %132 = vmatprep.subr.mxu0 0.0
    %133 = vmatpush2.msra.mxu0 0.0
    %134 = vmatprep.subr.mxu0 0.0
    %135 = vmatpush2.msra.mxu0 0.0
    %136 = vmatprep.subr.mxu0 0.0
    %137 = vmatpush2.msra.mxu0 0.0
    %138 = vmatprep.subr.mxu0 0.0
    %139 = vmatpush2.msra.mxu0 0.0
    %140 = vmatprep.mubr.f32.mxu0 0.0
    %141 = vmatmul.mubr.f32.gmra.mxu0 %v74
    %v142 = vpop.f32.mrf.mxu0
    %v143 = vadd.f32 %v70, %v142
    %v144 = vpop.f32.mrf.mxu0
    %145 = vdwg.mxu0
    %v146 = vxor.u32 %v143, 2147483648
    %v147 = vmul.f32 %v146, 1.442695
    %v148 = vpow.pop %v147
    %v149 = vadd.f32 %v148, 1.0
    %v150 = vrcp.pop %v149
    %v151 = vmul.f32 1.0, %v150
    %v152 = vmul.f32 %v143, %v151
    %v153 = vld [vmem:[#allocation7] sm:$0xff]
    %v154 = vld [vmem:[#allocation7 + $0x8] sm:$0xff]
    %v155 = vld [vmem:[#allocation7 + $0x10] sm:$0xff]
    %v156 = vld [vmem:[#allocation7 + $0x18] sm:$0xff]
    %v157 = vld [vmem:[#allocation7 + $0x20] sm:$0xff]
    %v158 = vld [vmem:[#allocation7 + $0x28] sm:$0xff]
    %v159 = vld [vmem:[#allocation7 + $0x30] sm:$0xff]
    %v160 = vld [vmem:[#allocation7 + $0x38] sm:$0xff]
    %v161 = vld [vmem:[#allocation7 + $0x40] sm:$0xff]
    %v162 = vld [vmem:[#allocation7 + $0x48] sm:$0xff]
    %v163 = vld [vmem:[#allocation7 + $0x50] sm:$0xff]
    %v164 = vld [vmem:[#allocation7 + $0x58] sm:$0xff]
    %v165 = vld [vmem:[#allocation7 + $0x60] sm:$0xff]
    %v166 = vld [vmem:[#allocation7 + $0x68] sm:$0xff]
    %v167 = vld [vmem:[#allocation7 + $0x70] sm:$0xff]
    %v168 = vld [vmem:[#allocation7 + $0x78] sm:$0xff]
    %v169 = vld [vmem:[%s4] sm:$0x1]
    %v171 = vlaneseq
    %v172 = vshrl.u32 %v171, 7
    %v173 = vsub.s32 0, %v172
    %v174 = vrot.slane %v169, %v173
    %176 = vmatprep.subr.mxu0 0.0
    %177 = vmatpush1.msra.mxu0 %v168
    %178 = vmatprep.subr.mxu0 0.0
    %179 = vmatpush1.msra.mxu0 %v167
    %180 = vmatprep.subr.mxu0 0.0
    %181 = vmatpush1.msra.mxu0 %v166
    %182 = vmatprep.subr.mxu0 0.0
    %183 = vmatpush1.msra.mxu0 %v165
    %184 = vmatprep.subr.mxu0 0.0
    %185 = vmatpush1.msra.mxu0 %v164
    %186 = vmatprep.subr.mxu0 0.0
    %187 = vmatpush1.msra.mxu0 %v163
    %188 = vmatprep.subr.mxu0 0.0
    %189 = vmatpush1.msra.mxu0 %v162
    %190 = vmatprep.subr.mxu0 0.0
    %191 = vmatpush1.msra.mxu0 %v161
    %192 = vmatprep.subr.mxu0 0.0
    %193 = vmatpush1.msra.mxu0 %v160
    %194 = vmatprep.subr.mxu0 0.0
    %195 = vmatpush1.msra.mxu0 %v159
    %196 = vmatprep.subr.mxu0 0.0
    %197 = vmatpush1.msra.mxu0 %v158
    %198 = vmatprep.subr.mxu0 0.0
    %199 = vmatpush1.msra.mxu0 %v157
    %200 = vmatprep.subr.mxu0 0.0
    %201 = vmatpush1.msra.mxu0 %v156
    %202 = vmatprep.subr.mxu0 0.0
    %203 = vmatpush1.msra.mxu0 %v155
    %204 = vmatprep.subr.mxu0 0.0
    %205 = vmatpush1.msra.mxu0 %v154
    %206 = vmatprep.subr.mxu0 0.0
    %207 = vmatpush1.msra.mxu0 %v153
    %208 = vmatprep.subr.mxu0 0.0
    %209 = vmatpush2.msra.mxu0 0.0
    %210 = vmatprep.subr.mxu0 0.0
    %211 = vmatpush2.msra.mxu0 0.0
    %212 = vmatprep.subr.mxu0 0.0
    %213 = vmatpush2.msra.mxu0 0.0
    %214 = vmatprep.subr.mxu0 0.0
    %215 = vmatpush2.msra.mxu0 0.0
    %216 = vmatprep.subr.mxu0 0.0
    %217 = vmatpush2.msra.mxu0 0.0
    %218 = vmatprep.subr.mxu0 0.0
    %219 = vmatpush2.msra.mxu0 0.0
    %220 = vmatprep.subr.mxu0 0.0
    %221 = vmatpush2.msra.mxu0 0.0
    %222 = vmatprep.subr.mxu0 0.0
    %223 = vmatpush2.msra.mxu0 0.0
    %224 = vmatprep.subr.mxu0 0.0
    %225 = vmatpush2.msra.mxu0 0.0
    %226 = vmatprep.subr.mxu0 0.0
    %227 = vmatpush2.msra.mxu0 0.0
    %228 = vmatprep.subr.mxu0 0.0
    %229 = vmatpush2.msra.mxu0 0.0
    %230 = vmatprep.subr.mxu0 0.0
    %231 = vmatpush2.msra.mxu0 0.0
    %232 = vmatprep.subr.mxu0 0.0
    %233 = vmatpush2.msra.mxu0 0.0
    %234 = vmatprep.subr.mxu0 0.0
    %235 = vmatpush2.msra.mxu0 0.0
    %236 = vmatprep.subr.mxu0 0.0
    %237 = vmatpush2.msra.mxu0 0.0
    %238 = vmatprep.subr.mxu0 0.0
    %239 = vmatpush2.msra.mxu0 0.0
    %240 = vmatprep.mubr.f32.mxu0 0.0
    %241 = vmatmul.mubr.f32.gmra.mxu0 %v152
    %v242 = vpop.f32.mrf.mxu0
    %v243 = vadd.f32 %v174, %v242
    %v244 = vpop.f32.mrf.mxu0
    %245 = vdwg.mxu0
    %v246 = vxor.u32 %v243, 2147483648
    %v247 = vmul.f32 %v246, 1.442695
    %v248 = vpow.pop %v247
    %v249 = vadd.f32 %v248, 1.0
    %v250 = vrcp.pop %v249
    %v251 = vmul.f32 1.0, %v250
    %v252 = vmul.f32 %v243, %v251
    %253 = vst [vmem:[#allocation8] sm:$0xff] %v252
    // Predicated region
    $region34: #{tpu_custom_call.1} parent=1 // pred_check
      _
    $region35: #{tpu_custom_call.1} parent=1 // pred_check_branch
      %255 = sbr.rel (0) target = $region37
    $region36: #{tpu_custom_call.1} parent=1 // pred_region
      %s257 = ssub.s32 128, 128
      %258 = vsyncadd [#allocation4], %s257
      %s260 = sshll.u32 [#allocation8], 4
      %s261 = int_to_ptr.vmem [resolvable:$true] %s260
      %263 = dma.vmem_to_hbm [thread:$0]  %s261, 128, %s5, [#allocation4]
    $region37: #{tpu_custom_call.1} parent=1 // pred_fallthru
      _
    // Predicated region
    $region38: #{tpu_custom_call.1} parent=1 // pred_check
      _
    $region39: #{tpu_custom_call.1} parent=1 // pred_check_branch
      %265 = sbr.rel (0) target = $region41
    $region40: #{tpu_custom_call.1} parent=1 // pred_region
      %266 = dma.done [#allocation4], 128
    $region41: #{tpu_custom_call.1} parent=1 // pred_fallthru
      _
    %267 = vsyncpa [#allocation3], 1
    %268 = vsyncpa [#allocation6], 1
    %269 = vsyncpa [#allocation4], 1

</llo_original>
